<compile_context>
chip_gen: v7x
topology: tpu7x:2x2x1
jax: 0.10.0
libtpu: 0.0.40
codegen_flags: <defaults>
</compile_context>

<pallas_src>
import jax
import jax.numpy as jnp
from jax.experimental import pallas as pl
from jax.experimental.pallas import tpu as pltpu

# ---- module hyper-parameters (consistent with the torch module) ----
DT = 0.1
LATENT_SIZE = 16
D_OUT = 32                       # output_size handed to the inner CTRNN2
J = int(LATENT_SIZE ** 0.5)      # = 4, RNN hidden size
LT = int(D_OUT / J)              # = 8, number of recurrence steps
TAU = 1.0
ALPHA = DT / TAU                 # = 0.1

SLAB_ROWS = 8                    # one full f32 vreg worth of sublanes
SLAB_LANES = 128                 # one full vreg worth of lanes
SUBLANE_BATCH = 8                # hidden carried as (8, J) — batch-shaped layout


def _ctrnn_kernel(slab_ref, out_ref):
    """Full LT-step CTRNN2 recurrence, fully unrolled, VPU/XLU only (no MXU).

    slab_ref : (8, 128) f32 packed operand slab:
                 rows 0..J-1, lanes 0..J-1 : Linear weight W (torch layout, out x in)
                 row  J     , lanes 0..J-1 : Linear bias b
                 everything else           : zero
    out_ref  : (1, 128) f32 lane-dense output row; lanes [t*J:(t+1)*J] hold the
               hidden state after step t (row-major flatten order); lanes >= LT*J
               are written as zeros.
    """
    alpha = jnp.float32(ALPHA)
    one_m_alpha = jnp.float32(1.0 - ALPHA)

    slab = slab_ref[...]                                   # one (8,128) load

    # Loop-invariant views of the packed operands (static slices, hoisted once).
    w_rows = [slab[o:o + 1, :J] for o in range(J)]         # W[o, :] as (1, J)
    b_row = slab[J:J + 1, :J]                              # (1, J)

    # Hidden state, sublane-batched layout (all rows identical here since the
    # reference recurrence starts from zeros and never reads the input).
    h = jnp.zeros((SUBLANE_BATCH, J), jnp.float32)

    step_rows = []
    for _ in range(LT):                                    # static -> fully unrolled
        # pre[:, o] = sum_i h[:, i] * W[o, i]   (J lane-reduces, no transposes)
        pre_cols = [
            jnp.sum(h * w_rows[o], axis=1, keepdims=True)  # (B, 1)
            for o in range(J)
        ]
        pre = jnp.concatenate(pre_cols, axis=1) + b_row    # (B, J)
        h_new = jnp.tanh(pre)                              # EUP
        h = h * one_m_alpha + h_new * alpha                # leaky blend
        step_rows.append(h[0:1, :])                        # hidden after this step

    # Single lane-dense (1,128) store: 32 valid lanes + zero padding.
    pad = jnp.zeros((1, SLAB_LANES - LT * J), jnp.float32)
    out_ref[...] = jnp.concatenate(step_rows + [pad], axis=1)


def ctrnn_forward(w, b):
    """w: (J, J) torch-layout Linear weight (out, in); b: (J,).

    Returns the flattened per-step hidden states, shape (LT*J,), matching
    torch.stack(outputs, dim=0).flatten().
    """
    # Pack both operands into a single (8,128) f32 slab -> exactly one DMA into
    # VMEM (and no separate transpose/reshape HLOs feeding the custom call).
    slab = jnp.zeros((SLAB_ROWS, SLAB_LANES), jnp.float32)
    slab = slab.at[:J, :J].set(w.astype(jnp.float32))
    slab = slab.at[J, :J].set(b.astype(jnp.float32))

    out = pl.pallas_call(
        _ctrnn_kernel,
        out_shape=jax.ShapeDtypeStruct((1, SLAB_LANES), jnp.float32),
        in_specs=[pl.BlockSpec(memory_space=pltpu.MemorySpace.VMEM)],
        out_specs=pl.BlockSpec(memory_space=pltpu.MemorySpace.VMEM),
    )(slab)

    return out[0, : LT * J]                                # (32,)


@jax.jit
def decoder_forward(x, w, b):
    """Pallas equivalent of Decoder.forward.

    x is only consumed for interface fidelity (torch uses it just for device
    placement); the recurrence starts from zeros(J), exactly like
    CTRNN2.init_hidden.  Returns (mu, scale) — the parameters of the Normal
    distribution the torch module returns.
    """
    del x  # not used numerically by the reference module
    mu = ctrnn_forward(w, b)                               # (LT*J,)
    scale = jnp.ones_like(mu)
    return mu, scale


def init_params(key):
    """Deterministic nn.Linear(J, J)-style init: U(-1/sqrt(J), 1/sqrt(J))."""
    kw, kb = jax.random.split(key)
    bound = 1.0 / (J ** 0.5)
    w = jax.random.uniform(kw, (J, J), jnp.float32, -bound, bound)   # (out, in)
    b = jax.random.uniform(kb, (J,), jnp.float32, -bound, bound)
    return w, b


def _reference(w, b):
    """Pure-JAX reference of the torch forward, for a sanity check."""
    h = jnp.zeros((J,), jnp.float32)
    outs = []
    for _ in range(LT):
        h_new = jnp.tanh(w @ h + b)
        h = h * (1.0 - ALPHA) + h_new * ALPHA
        outs.append(h)
    return jnp.stack(outs, axis=0).reshape(-1)


if __name__ == "__main__":
    key = jax.random.PRNGKey(0)
    kp, kx = jax.random.split(key)
    w, b = init_params(kp)
    x = jax.random.normal(kx, (LATENT_SIZE,), jnp.float32)  # decoder input (latent vector)

    mu, scale = decoder_forward(x, w, b)
    mu = jax.block_until_ready(mu)
    scale = jax.block_until_ready(scale)

    ref_mu = _reference(w, b)
    assert mu.shape == (LT * J,) and scale.shape == (LT * J,)
    assert jnp.allclose(mu, ref_mu, atol=1e-5), "kernel mismatch vs reference"
    assert jnp.all(scale == 1.0)
    print("KERNEL_OK")
</pallas_src>

<mosaic_0001>
module attributes {stable_mosaic.version = 11 : i64} {
  func.func @_ctrnn_kernel(%arg0: memref<8x128xf32, #tpu.memory_space<vmem>>, %arg1: memref<1x128xf32, #tpu.memory_space<vmem>>) attributes {dimension_semantics = [], scalar_prefetch = 0 : i64, scratch_operands = 0 : i64, tpu.core_type = #tpu.core_type<tc>} {
    %c0 = arith.constant 0 : index
    %c0_0 = arith.constant 0 : index
    %0 = vector.load %arg0[%c0, %c0_0] : memref<8x128xf32, #tpu.memory_space<vmem>>, vector<8x128xf32>
    %1 = vector.extract_strided_slice %0 {offsets = [0, 0], sizes = [1, 4], strides = [1, 1]} : vector<8x128xf32> to vector<1x4xf32>
    %2 = vector.extract_strided_slice %0 {offsets = [1, 0], sizes = [1, 4], strides = [1, 1]} : vector<8x128xf32> to vector<1x4xf32>
    %3 = vector.extract_strided_slice %0 {offsets = [2, 0], sizes = [1, 4], strides = [1, 1]} : vector<8x128xf32> to vector<1x4xf32>
    %4 = vector.extract_strided_slice %0 {offsets = [3, 0], sizes = [1, 4], strides = [1, 1]} : vector<8x128xf32> to vector<1x4xf32>
    %5 = vector.extract_strided_slice %0 {offsets = [4, 0], sizes = [1, 4], strides = [1, 1]} : vector<8x128xf32> to vector<1x4xf32>
    %cst = arith.constant 0.000000e+00 : f32
    %6 = vector.broadcast %cst : f32 to vector<8x4xf32>
    %7 = vector.broadcast %1 : vector<1x4xf32> to vector<8x4xf32>
    %8 = arith.mulf %6, %7 : vector<8x4xf32>
    %cst_1 = arith.constant dense<0.000000e+00> : vector<8xf32>
    %9 = vector.multi_reduction <add>, %8, %cst_1 [1] : vector<8x4xf32> to vector<8xf32>
    %10 = vector.shape_cast %9 : vector<8xf32> to vector<8x1xf32>
    %11 = vector.broadcast %2 : vector<1x4xf32> to vector<8x4xf32>
    %12 = arith.mulf %6, %11 : vector<8x4xf32>
    %cst_2 = arith.constant dense<0.000000e+00> : vector<8xf32>
    %13 = vector.multi_reduction <add>, %12, %cst_2 [1] : vector<8x4xf32> to vector<8xf32>
    %14 = vector.shape_cast %13 : vector<8xf32> to vector<8x1xf32>
    %15 = vector.broadcast %3 : vector<1x4xf32> to vector<8x4xf32>
    %16 = arith.mulf %6, %15 : vector<8x4xf32>
    %cst_3 = arith.constant dense<0.000000e+00> : vector<8xf32>
    %17 = vector.multi_reduction <add>, %16, %cst_3 [1] : vector<8x4xf32> to vector<8xf32>
    %18 = vector.shape_cast %17 : vector<8xf32> to vector<8x1xf32>
    %19 = vector.broadcast %4 : vector<1x4xf32> to vector<8x4xf32>
    %20 = arith.mulf %6, %19 : vector<8x4xf32>
    %cst_4 = arith.constant dense<0.000000e+00> : vector<8xf32>
    %21 = vector.multi_reduction <add>, %20, %cst_4 [1] : vector<8x4xf32> to vector<8xf32>
    %22 = vector.shape_cast %21 : vector<8xf32> to vector<8x1xf32>
    %23 = tpu.concatenate %10, %14, %18, %22 in 1 : vector<8x1xf32>, vector<8x1xf32>, vector<8x1xf32>, vector<8x1xf32> -> vector<8x4xf32>
    %24 = vector.broadcast %5 : vector<1x4xf32> to vector<8x4xf32>
    %25 = arith.addf %23, %24 : vector<8x4xf32>
    %26 = math.tanh %25 : vector<8x4xf32>
    %cst_5 = arith.constant 0.899999976 : f32
    %27 = vector.broadcast %cst_5 : f32 to vector<8x4xf32>
    %28 = arith.mulf %6, %27 : vector<8x4xf32>
    %cst_6 = arith.constant 1.000000e-01 : f32
    %29 = vector.broadcast %cst_6 : f32 to vector<8x4xf32>
    %30 = arith.mulf %26, %29 : vector<8x4xf32>
    %31 = arith.addf %28, %30 : vector<8x4xf32>
    %32 = vector.extract_strided_slice %31 {offsets = [0, 0], sizes = [1, 4], strides = [1, 1]} : vector<8x4xf32> to vector<1x4xf32>
    %33 = vector.broadcast %1 : vector<1x4xf32> to vector<8x4xf32>
    %34 = arith.mulf %31, %33 : vector<8x4xf32>
    %cst_7 = arith.constant dense<0.000000e+00> : vector<8xf32>
    %35 = vector.multi_reduction <add>, %34, %cst_7 [1] : vector<8x4xf32> to vector<8xf32>
    %36 = vector.shape_cast %35 : vector<8xf32> to vector<8x1xf32>
    %37 = vector.broadcast %2 : vector<1x4xf32> to vector<8x4xf32>
    %38 = arith.mulf %31, %37 : vector<8x4xf32>
    %cst_8 = arith.constant dense<0.000000e+00> : vector<8xf32>
    %39 = vector.multi_reduction <add>, %38, %cst_8 [1] : vector<8x4xf32> to vector<8xf32>
    %40 = vector.shape_cast %39 : vector<8xf32> to vector<8x1xf32>
    %41 = vector.broadcast %3 : vector<1x4xf32> to vector<8x4xf32>
    %42 = arith.mulf %31, %41 : vector<8x4xf32>
    %cst_9 = arith.constant dense<0.000000e+00> : vector<8xf32>
    %43 = vector.multi_reduction <add>, %42, %cst_9 [1] : vector<8x4xf32> to vector<8xf32>
    %44 = vector.shape_cast %43 : vector<8xf32> to vector<8x1xf32>
    %45 = vector.broadcast %4 : vector<1x4xf32> to vector<8x4xf32>
    %46 = arith.mulf %31, %45 : vector<8x4xf32>
    %cst_10 = arith.constant dense<0.000000e+00> : vector<8xf32>
    %47 = vector.multi_reduction <add>, %46, %cst_10 [1] : vector<8x4xf32> to vector<8xf32>
    %48 = vector.shape_cast %47 : vector<8xf32> to vector<8x1xf32>
    %49 = tpu.concatenate %36, %40, %44, %48 in 1 : vector<8x1xf32>, vector<8x1xf32>, vector<8x1xf32>, vector<8x1xf32> -> vector<8x4xf32>
    %50 = vector.broadcast %5 : vector<1x4xf32> to vector<8x4xf32>
    %51 = arith.addf %49, %50 : vector<8x4xf32>
    %52 = math.tanh %51 : vector<8x4xf32>
    %cst_11 = arith.constant 0.899999976 : f32
    %53 = vector.broadcast %cst_11 : f32 to vector<8x4xf32>
    %54 = arith.mulf %31, %53 : vector<8x4xf32>
    %cst_12 = arith.constant 1.000000e-01 : f32
    %55 = vector.broadcast %cst_12 : f32 to vector<8x4xf32>
    %56 = arith.mulf %52, %55 : vector<8x4xf32>
    %57 = arith.addf %54, %56 : vector<8x4xf32>
    %58 = vector.extract_strided_slice %57 {offsets = [0, 0], sizes = [1, 4], strides = [1, 1]} : vector<8x4xf32> to vector<1x4xf32>
    %59 = vector.broadcast %1 : vector<1x4xf32> to vector<8x4xf32>
    %60 = arith.mulf %57, %59 : vector<8x4xf32>
    %cst_13 = arith.constant dense<0.000000e+00> : vector<8xf32>
    %61 = vector.multi_reduction <add>, %60, %cst_13 [1] : vector<8x4xf32> to vector<8xf32>
    %62 = vector.shape_cast %61 : vector<8xf32> to vector<8x1xf32>
    %63 = vector.broadcast %2 : vector<1x4xf32> to vector<8x4xf32>
    %64 = arith.mulf %57, %63 : vector<8x4xf32>
    %cst_14 = arith.constant dense<0.000000e+00> : vector<8xf32>
    %65 = vector.multi_reduction <add>, %64, %cst_14 [1] : vector<8x4xf32> to vector<8xf32>
    %66 = vector.shape_cast %65 : vector<8xf32> to vector<8x1xf32>
    %67 = vector.broadcast %3 : vector<1x4xf32> to vector<8x4xf32>
    %68 = arith.mulf %57, %67 : vector<8x4xf32>
    %cst_15 = arith.constant dense<0.000000e+00> : vector<8xf32>
    %69 = vector.multi_reduction <add>, %68, %cst_15 [1] : vector<8x4xf32> to vector<8xf32>
    %70 = vector.shape_cast %69 : vector<8xf32> to vector<8x1xf32>
    %71 = vector.broadcast %4 : vector<1x4xf32> to vector<8x4xf32>
    %72 = arith.mulf %57, %71 : vector<8x4xf32>
    %cst_16 = arith.constant dense<0.000000e+00> : vector<8xf32>
    %73 = vector.multi_reduction <add>, %72, %cst_16 [1] : vector<8x4xf32> to vector<8xf32>
    %74 = vector.shape_cast %73 : vector<8xf32> to vector<8x1xf32>
    %75 = tpu.concatenate %62, %66, %70, %74 in 1 : vector<8x1xf32>, vector<8x1xf32>, vector<8x1xf32>, vector<8x1xf32> -> vector<8x4xf32>
    %76 = vector.broadcast %5 : vector<1x4xf32> to vector<8x4xf32>
    %77 = arith.addf %75, %76 : vector<8x4xf32>
    %78 = math.tanh %77 : vector<8x4xf32>
    %cst_17 = arith.constant 0.899999976 : f32
    %79 = vector.broadcast %cst_17 : f32 to vector<8x4xf32>
    %80 = arith.mulf %57, %79 : vector<8x4xf32>
    %cst_18 = arith.constant 1.000000e-01 : f32
    %81 = vector.broadcast %cst_18 : f32 to vector<8x4xf32>
    %82 = arith.mulf %78, %81 : vector<8x4xf32>
    %83 = arith.addf %80, %82 : vector<8x4xf32>
    %84 = vector.extract_strided_slice %83 {offsets = [0, 0], sizes = [1, 4], strides = [1, 1]} : vector<8x4xf32> to vector<1x4xf32>
    %85 = vector.broadcast %1 : vector<1x4xf32> to vector<8x4xf32>
    %86 = arith.mulf %83, %85 : vector<8x4xf32>
    %cst_19 = arith.constant dense<0.000000e+00> : vector<8xf32>
    %87 = vector.multi_reduction <add>, %86, %cst_19 [1] : vector<8x4xf32> to vector<8xf32>
    %88 = vector.shape_cast %87 : vector<8xf32> to vector<8x1xf32>
    %89 = vector.broadcast %2 : vector<1x4xf32> to vector<8x4xf32>
    %90 = arith.mulf %83, %89 : vector<8x4xf32>
    %cst_20 = arith.constant dense<0.000000e+00> : vector<8xf32>
    %91 = vector.multi_reduction <add>, %90, %cst_20 [1] : vector<8x4xf32> to vector<8xf32>
    %92 = vector.shape_cast %91 : vector<8xf32> to vector<8x1xf32>
    %93 = vector.broadcast %3 : vector<1x4xf32> to vector<8x4xf32>
    %94 = arith.mulf %83, %93 : vector<8x4xf32>
    %cst_21 = arith.constant dense<0.000000e+00> : vector<8xf32>
    %95 = vector.multi_reduction <add>, %94, %cst_21 [1] : vector<8x4xf32> to vector<8xf32>
    %96 = vector.shape_cast %95 : vector<8xf32> to vector<8x1xf32>
    %97 = vector.broadcast %4 : vector<1x4xf32> to vector<8x4xf32>
    %98 = arith.mulf %83, %97 : vector<8x4xf32>
    %cst_22 = arith.constant dense<0.000000e+00> : vector<8xf32>
    %99 = vector.multi_reduction <add>, %98, %cst_22 [1] : vector<8x4xf32> to vector<8xf32>
    %100 = vector.shape_cast %99 : vector<8xf32> to vector<8x1xf32>
    %101 = tpu.concatenate %88, %92, %96, %100 in 1 : vector<8x1xf32>, vector<8x1xf32>, vector<8x1xf32>, vector<8x1xf32> -> vector<8x4xf32>
    %102 = vector.broadcast %5 : vector<1x4xf32> to vector<8x4xf32>
    %103 = arith.addf %101, %102 : vector<8x4xf32>
    %104 = math.tanh %103 : vector<8x4xf32>
    %cst_23 = arith.constant 0.899999976 : f32
    %105 = vector.broadcast %cst_23 : f32 to vector<8x4xf32>
    %106 = arith.mulf %83, %105 : vector<8x4xf32>
    %cst_24 = arith.constant 1.000000e-01 : f32
    %107 = vector.broadcast %cst_24 : f32 to vector<8x4xf32>
    %108 = arith.mulf %104, %107 : vector<8x4xf32>
    %109 = arith.addf %106, %108 : vector<8x4xf32>
    %110 = vector.extract_strided_slice %109 {offsets = [0, 0], sizes = [1, 4], strides = [1, 1]} : vector<8x4xf32> to vector<1x4xf32>
    %111 = vector.broadcast %1 : vector<1x4xf32> to vector<8x4xf32>
    %112 = arith.mulf %109, %111 : vector<8x4xf32>
    %cst_25 = arith.constant dense<0.000000e+00> : vector<8xf32>
    %113 = vector.multi_reduction <add>, %112, %cst_25 [1] : vector<8x4xf32> to vector<8xf32>
    %114 = vector.shape_cast %113 : vector<8xf32> to vector<8x1xf32>
    %115 = vector.broadcast %2 : vector<1x4xf32> to vector<8x4xf32>
    %116 = arith.mulf %109, %115 : vector<8x4xf32>
    %cst_26 = arith.constant dense<0.000000e+00> : vector<8xf32>
    %117 = vector.multi_reduction <add>, %116, %cst_26 [1] : vector<8x4xf32> to vector<8xf32>
    %118 = vector.shape_cast %117 : vector<8xf32> to vector<8x1xf32>
    %119 = vector.broadcast %3 : vector<1x4xf32> to vector<8x4xf32>
    %120 = arith.mulf %109, %119 : vector<8x4xf32>
    %cst_27 = arith.constant dense<0.000000e+00> : vector<8xf32>
    %121 = vector.multi_reduction <add>, %120, %cst_27 [1] : vector<8x4xf32> to vector<8xf32>
    %122 = vector.shape_cast %121 : vector<8xf32> to vector<8x1xf32>
    %123 = vector.broadcast %4 : vector<1x4xf32> to vector<8x4xf32>
    %124 = arith.mulf %109, %123 : vector<8x4xf32>
    %cst_28 = arith.constant dense<0.000000e+00> : vector<8xf32>
    %125 = vector.multi_reduction <add>, %124, %cst_28 [1] : vector<8x4xf32> to vector<8xf32>
    %126 = vector.shape_cast %125 : vector<8xf32> to vector<8x1xf32>
    %127 = tpu.concatenate %114, %118, %122, %126 in 1 : vector<8x1xf32>, vector<8x1xf32>, vector<8x1xf32>, vector<8x1xf32> -> vector<8x4xf32>
    %128 = vector.broadcast %5 : vector<1x4xf32> to vector<8x4xf32>
    %129 = arith.addf %127, %128 : vector<8x4xf32>
    %130 = math.tanh %129 : vector<8x4xf32>
    %cst_29 = arith.constant 0.899999976 : f32
    %131 = vector.broadcast %cst_29 : f32 to vector<8x4xf32>
    %132 = arith.mulf %109, %131 : vector<8x4xf32>
    %cst_30 = arith.constant 1.000000e-01 : f32
    %133 = vector.broadcast %cst_30 : f32 to vector<8x4xf32>
    %134 = arith.mulf %130, %133 : vector<8x4xf32>
    %135 = arith.addf %132, %134 : vector<8x4xf32>
    %136 = vector.extract_strided_slice %135 {offsets = [0, 0], sizes = [1, 4], strides = [1, 1]} : vector<8x4xf32> to vector<1x4xf32>
    %137 = vector.broadcast %1 : vector<1x4xf32> to vector<8x4xf32>
    %138 = arith.mulf %135, %137 : vector<8x4xf32>
    %cst_31 = arith.constant dense<0.000000e+00> : vector<8xf32>
    %139 = vector.multi_reduction <add>, %138, %cst_31 [1] : vector<8x4xf32> to vector<8xf32>
    %140 = vector.shape_cast %139 : vector<8xf32> to vector<8x1xf32>
    %141 = vector.broadcast %2 : vector<1x4xf32> to vector<8x4xf32>
    %142 = arith.mulf %135, %141 : vector<8x4xf32>
    %cst_32 = arith.constant dense<0.000000e+00> : vector<8xf32>
    %143 = vector.multi_reduction <add>, %142, %cst_32 [1] : vector<8x4xf32> to vector<8xf32>
    %144 = vector.shape_cast %143 : vector<8xf32> to vector<8x1xf32>
    %145 = vector.broadcast %3 : vector<1x4xf32> to vector<8x4xf32>
    %146 = arith.mulf %135, %145 : vector<8x4xf32>
    %cst_33 = arith.constant dense<0.000000e+00> : vector<8xf32>
    %147 = vector.multi_reduction <add>, %146, %cst_33 [1] : vector<8x4xf32> to vector<8xf32>
    %148 = vector.shape_cast %147 : vector<8xf32> to vector<8x1xf32>
    %149 = vector.broadcast %4 : vector<1x4xf32> to vector<8x4xf32>
    %150 = arith.mulf %135, %149 : vector<8x4xf32>
    %cst_34 = arith.constant dense<0.000000e+00> : vector<8xf32>
    %151 = vector.multi_reduction <add>, %150, %cst_34 [1] : vector<8x4xf32> to vector<8xf32>
    %152 = vector.shape_cast %151 : vector<8xf32> to vector<8x1xf32>
    %153 = tpu.concatenate %140, %144, %148, %152 in 1 : vector<8x1xf32>, vector<8x1xf32>, vector<8x1xf32>, vector<8x1xf32> -> vector<8x4xf32>
    %154 = vector.broadcast %5 : vector<1x4xf32> to vector<8x4xf32>
    %155 = arith.addf %153, %154 : vector<8x4xf32>
    %156 = math.tanh %155 : vector<8x4xf32>
    %cst_35 = arith.constant 0.899999976 : f32
    %157 = vector.broadcast %cst_35 : f32 to vector<8x4xf32>
    %158 = arith.mulf %135, %157 : vector<8x4xf32>
    %cst_36 = arith.constant 1.000000e-01 : f32
    %159 = vector.broadcast %cst_36 : f32 to vector<8x4xf32>
    %160 = arith.mulf %156, %159 : vector<8x4xf32>
    %161 = arith.addf %158, %160 : vector<8x4xf32>
    %162 = vector.extract_strided_slice %161 {offsets = [0, 0], sizes = [1, 4], strides = [1, 1]} : vector<8x4xf32> to vector<1x4xf32>
    %163 = vector.broadcast %1 : vector<1x4xf32> to vector<8x4xf32>
    %164 = arith.mulf %161, %163 : vector<8x4xf32>
    %cst_37 = arith.constant dense<0.000000e+00> : vector<8xf32>
    %165 = vector.multi_reduction <add>, %164, %cst_37 [1] : vector<8x4xf32> to vector<8xf32>
    %166 = vector.shape_cast %165 : vector<8xf32> to vector<8x1xf32>
    %167 = vector.broadcast %2 : vector<1x4xf32> to vector<8x4xf32>
    %168 = arith.mulf %161, %167 : vector<8x4xf32>
    %cst_38 = arith.constant dense<0.000000e+00> : vector<8xf32>
    %169 = vector.multi_reduction <add>, %168, %cst_38 [1] : vector<8x4xf32> to vector<8xf32>
    %170 = vector.shape_cast %169 : vector<8xf32> to vector<8x1xf32>
    %171 = vector.broadcast %3 : vector<1x4xf32> to vector<8x4xf32>
    %172 = arith.mulf %161, %171 : vector<8x4xf32>
    %cst_39 = arith.constant dense<0.000000e+00> : vector<8xf32>
    %173 = vector.multi_reduction <add>, %172, %cst_39 [1] : vector<8x4xf32> to vector<8xf32>
    %174 = vector.shape_cast %173 : vector<8xf32> to vector<8x1xf32>
    %175 = vector.broadcast %4 : vector<1x4xf32> to vector<8x4xf32>
    %176 = arith.mulf %161, %175 : vector<8x4xf32>
    %cst_40 = arith.constant dense<0.000000e+00> : vector<8xf32>
    %177 = vector.multi_reduction <add>, %176, %cst_40 [1] : vector<8x4xf32> to vector<8xf32>
    %178 = vector.shape_cast %177 : vector<8xf32> to vector<8x1xf32>
    %179 = tpu.concatenate %166, %170, %174, %178 in 1 : vector<8x1xf32>, vector<8x1xf32>, vector<8x1xf32>, vector<8x1xf32> -> vector<8x4xf32>
    %180 = vector.broadcast %5 : vector<1x4xf32> to vector<8x4xf32>
    %181 = arith.addf %179, %180 : vector<8x4xf32>
    %182 = math.tanh %181 : vector<8x4xf32>
    %cst_41 = arith.constant 0.899999976 : f32
    %183 = vector.broadcast %cst_41 : f32 to vector<8x4xf32>
    %184 = arith.mulf %161, %183 : vector<8x4xf32>
    %cst_42 = arith.constant 1.000000e-01 : f32
    %185 = vector.broadcast %cst_42 : f32 to vector<8x4xf32>
    %186 = arith.mulf %182, %185 : vector<8x4xf32>
    %187 = arith.addf %184, %186 : vector<8x4xf32>
    %188 = vector.extract_strided_slice %187 {offsets = [0, 0], sizes = [1, 4], strides = [1, 1]} : vector<8x4xf32> to vector<1x4xf32>
    %189 = vector.broadcast %1 : vector<1x4xf32> to vector<8x4xf32>
    %190 = arith.mulf %187, %189 : vector<8x4xf32>
    %cst_43 = arith.constant dense<0.000000e+00> : vector<8xf32>
    %191 = vector.multi_reduction <add>, %190, %cst_43 [1] : vector<8x4xf32> to vector<8xf32>
    %192 = vector.shape_cast %191 : vector<8xf32> to vector<8x1xf32>
    %193 = vector.broadcast %2 : vector<1x4xf32> to vector<8x4xf32>
    %194 = arith.mulf %187, %193 : vector<8x4xf32>
    %cst_44 = arith.constant dense<0.000000e+00> : vector<8xf32>
    %195 = vector.multi_reduction <add>, %194, %cst_44 [1] : vector<8x4xf32> to vector<8xf32>
    %196 = vector.shape_cast %195 : vector<8xf32> to vector<8x1xf32>
    %197 = vector.broadcast %3 : vector<1x4xf32> to vector<8x4xf32>
    %198 = arith.mulf %187, %197 : vector<8x4xf32>
    %cst_45 = arith.constant dense<0.000000e+00> : vector<8xf32>
    %199 = vector.multi_reduction <add>, %198, %cst_45 [1] : vector<8x4xf32> to vector<8xf32>
    %200 = vector.shape_cast %199 : vector<8xf32> to vector<8x1xf32>
    %201 = vector.broadcast %4 : vector<1x4xf32> to vector<8x4xf32>
    %202 = arith.mulf %187, %201 : vector<8x4xf32>
    %cst_46 = arith.constant dense<0.000000e+00> : vector<8xf32>
    %203 = vector.multi_reduction <add>, %202, %cst_46 [1] : vector<8x4xf32> to vector<8xf32>
    %204 = vector.shape_cast %203 : vector<8xf32> to vector<8x1xf32>
    %205 = tpu.concatenate %192, %196, %200, %204 in 1 : vector<8x1xf32>, vector<8x1xf32>, vector<8x1xf32>, vector<8x1xf32> -> vector<8x4xf32>
    %206 = vector.broadcast %5 : vector<1x4xf32> to vector<8x4xf32>
    %207 = arith.addf %205, %206 : vector<8x4xf32>
    %208 = math.tanh %207 : vector<8x4xf32>
    %cst_47 = arith.constant 0.899999976 : f32
    %209 = vector.broadcast %cst_47 : f32 to vector<8x4xf32>
    %210 = arith.mulf %187, %209 : vector<8x4xf32>
    %cst_48 = arith.constant 1.000000e-01 : f32
    %211 = vector.broadcast %cst_48 : f32 to vector<8x4xf32>
    %212 = arith.mulf %208, %211 : vector<8x4xf32>
    %213 = arith.addf %210, %212 : vector<8x4xf32>
    %214 = vector.extract_strided_slice %213 {offsets = [0, 0], sizes = [1, 4], strides = [1, 1]} : vector<8x4xf32> to vector<1x4xf32>
    %cst_49 = arith.constant 0.000000e+00 : f32
    %215 = vector.broadcast %cst_49 : f32 to vector<1x96xf32>
    %216 = tpu.concatenate %32, %58, %84, %110, %136, %162, %188, %214, %215 in 1 : vector<1x4xf32>, vector<1x4xf32>, vector<1x4xf32>, vector<1x4xf32>, vector<1x4xf32>, vector<1x4xf32>, vector<1x4xf32>, vector<1x4xf32>, vector<1x96xf32> -> vector<1x128xf32>
    %c0_50 = arith.constant 0 : index
    %c0_51 = arith.constant 0 : index
    %217 = vector.load %arg1[%c0_50, %c0_51] : memref<1x128xf32, #tpu.memory_space<vmem>>, vector<1x128xf32>
    tpu.vector_store %arg1[%c0_50, %c0_51], %216 {strides = array<i32>} : memref<1x128xf32, #tpu.memory_space<vmem>>, vector<1x128xf32>,
    return
  }
}

</mosaic_0001>

<llo_original>
// kernel: decoder_forward.1
$region0: #{decoder_forward.1}
  #allocation0 [shape = 'u32[]', space=smem, size = 0x4, offset = 0x4, fixed_abs, tag = 'smem constant byte address 0x4 - core index']
  #allocation1 [shape = 'u32[144,128]{1,0:T(1,128)}', space=vmem, size = 0x12000, scoped, tag = 'internal scratch']
  %s0 = inlined_call_operand.vmem [shape: f32[8,128], index: 0, kind: input, shape index: {}]
  %s1 = inlined_call_operand.vmem [shape: f32[1,128], index: 1, kind: output, shape index: {}]
  %s2 = sld [smem:[#allocation0]]
  $region14: #{decoder_forward.1} parent=0
    _
  %s4 = ssub.s32 1, %s2
  %s5 = scalar_select 0, %s4, %s2
  // Predicated region
  $region2: #{decoder_forward.1} parent=0 // pred_check
    _
  $region3: #{decoder_forward.1} parent=0 // pred_check_branch
    %7 = sbr.rel (0) target = $region5
  $region4: #{decoder_forward.1} parent=0 // pred_region
    _
  $region5: #{decoder_forward.1} parent=0 // pred_fallthru
    _
  %v8 = vld [vmem:[%s0] sm:$0xff]
  %v9 = vlaneseq
  %v10 = vshrl.u32 %v9, 7
  %v11 = vsub.s32 0, %v10
  %v12 = vrot.slane %v8, %v11
  %v13 = vmul.f32 %v12, 0.0
  %vm14 = vcmask 31744
  %v15 = vsel %vm14, %v13, 0.0
  %16 = vadd.xlane.f32.xlu0 %v15
  %v17 = vpop.xlane.xlu0 %16
  %v18 = vlaneseq
  %v19 = vshrl.u32 %v18, 7
  %v20 = vsub.s32 1, %v19
  %v21 = vrot.slane %v8, %v20
  %v22 = vmul.f32 %v21, 0.0
  %v23 = vsel %vm14, %v22, 0.0
  %24 = vadd.xlane.f32.xlu0 %v23
  %v25 = vpop.xlane.xlu0 %24
  %v26 = vlaneseq
  %v27 = vshrl.u32 %v26, 7
  %v28 = vsub.s32 2, %v27
  %v29 = vrot.slane %v8, %v28
  %v30 = vmul.f32 %v29, 0.0
  %v31 = vsel %vm14, %v30, 0.0
  %32 = vadd.xlane.f32.xlu0 %v31
  %v33 = vpop.xlane.xlu0 %32
  %v34 = vlaneseq
  %v35 = vshrl.u32 %v34, 7
  %v36 = vsub.s32 3, %v35
  %v37 = vrot.slane %v8, %v36
  %v38 = vmul.f32 %v37, 0.0
  %v39 = vsel %vm14, %v38, 0.0
  %40 = vadd.xlane.f32.xlu0 %v39
  %v41 = vpop.xlane.xlu0 %40
  %vm42 = vcmask 7168
  %v43 = vsel %vm42, %v17, %v25
  %vm44 = vcmask 15360
  %v45 = vsel %vm44, %v43, %v33
  %vm46 = vcmask 23552
  %v47 = vsel %vm46, %v45, %v41
  %v48 = vlaneseq
  %v49 = vshrl.u32 %v48, 7
  %v50 = vsub.s32 4, %v49
  %v51 = vrot.slane %v8, %v50
  %v52 = vadd.f32 %v47, %v51
  %v53 = vtanh.pop %v52
  %v54 = vmul.f32 %v53, 0.1
  %v55 = vadd.f32 %v54, 0.0
  %v56 = vmul.f32 %v55, %v12
  %v57 = vsel %vm14, %v56, 0.0
  %58 = vadd.xlane.f32.xlu0 %v57
  %v59 = vpop.xlane.xlu0 %58
  %v60 = vmul.f32 %v55, %v21
  %v61 = vsel %vm14, %v60, 0.0
  %62 = vadd.xlane.f32.xlu0 %v61
  %v63 = vpop.xlane.xlu0 %62
  %v64 = vmul.f32 %v55, %v29
  %v65 = vsel %vm14, %v64, 0.0
  %66 = vadd.xlane.f32.xlu0 %v65
  %v67 = vpop.xlane.xlu0 %66
  %v68 = vmul.f32 %v55, %v37
  %v69 = vsel %vm14, %v68, 0.0
  %70 = vadd.xlane.f32.xlu0 %v69
  %v71 = vpop.xlane.xlu0 %70
  %v72 = vsel %vm42, %v59, %v63
  %v73 = vsel %vm44, %v72, %v67
  %v74 = vsel %vm46, %v73, %v71
  %v75 = vadd.f32 %v74, %v51
  %v76 = vtanh.pop %v75
  %v77 = vmul.f32 %v55, 0.9
  %v78 = vmul.f32 %v76, 0.1
  %v79 = vadd.f32 %v77, %v78
  %v80 = vmul.f32 %v79, %v12
  %v81 = vsel %vm14, %v80, 0.0
  %82 = vadd.xlane.f32.xlu0 %v81
  %v83 = vpop.xlane.xlu0 %82
  %v84 = vmul.f32 %v79, %v21
  %v85 = vsel %vm14, %v84, 0.0
  %86 = vadd.xlane.f32.xlu0 %v85
  %v87 = vpop.xlane.xlu0 %86
  %v88 = vmul.f32 %v79, %v29
  %v89 = vsel %vm14, %v88, 0.0
  %90 = vadd.xlane.f32.xlu0 %v89
  %v91 = vpop.xlane.xlu0 %90
  %v92 = vmul.f32 %v79, %v37
  %v93 = vsel %vm14, %v92, 0.0
  %94 = vadd.xlane.f32.xlu0 %v93
  %v95 = vpop.xlane.xlu0 %94
  %v96 = vsel %vm42, %v83, %v87
  %v97 = vsel %vm44, %v96, %v91
  %v98 = vsel %vm46, %v97, %v95
  %v99 = vadd.f32 %v98, %v51
  %v100 = vtanh.pop %v99
  %v101 = vmul.f32 %v79, 0.9
  %v102 = vmul.f32 %v100, 0.1
  %v103 = vadd.f32 %v101, %v102
  %v104 = vmul.f32 %v103, %v12
  %v105 = vsel %vm14, %v104, 0.0
  %106 = vadd.xlane.f32.xlu0 %v105
  %v107 = vpop.xlane.xlu0 %106
  %v108 = vmul.f32 %v103, %v21
  %v109 = vsel %vm14, %v108, 0.0
  %110 = vadd.xlane.f32.xlu0 %v109
  %v111 = vpop.xlane.xlu0 %110
  %v112 = vmul.f32 %v103, %v29
  %v113 = vsel %vm14, %v112, 0.0
  %114 = vadd.xlane.f32.xlu0 %v113
  %v115 = vpop.xlane.xlu0 %114
  %v116 = vmul.f32 %v103, %v37
  %v117 = vsel %vm14, %v116, 0.0
  %118 = vadd.xlane.f32.xlu0 %v117
  %v119 = vpop.xlane.xlu0 %118
  %v120 = vsel %vm42, %v107, %v111
  %v121 = vsel %vm44, %v120, %v115
  %v122 = vsel %vm46, %v121, %v119
  %v123 = vadd.f32 %v122, %v51
  %v124 = vtanh.pop %v123
  %v125 = vmul.f32 %v103, 0.9
  %v126 = vmul.f32 %v124, 0.1
  %v127 = vadd.f32 %v125, %v126
  %v128 = vmul.f32 %v127, %v12
  %v129 = vsel %vm14, %v128, 0.0
  %130 = vadd.xlane.f32.xlu0 %v129
  %v131 = vpop.xlane.xlu0 %130
  %v132 = vmul.f32 %v127, %v21
  %v133 = vsel %vm14, %v132, 0.0
  %134 = vadd.xlane.f32.xlu0 %v133
  %v135 = vpop.xlane.xlu0 %134
  %v136 = vmul.f32 %v127, %v29
  %v137 = vsel %vm14, %v136, 0.0
  %138 = vadd.xlane.f32.xlu0 %v137
  %v139 = vpop.xlane.xlu0 %138
  %v140 = vmul.f32 %v127, %v37
  %v141 = vsel %vm14, %v140, 0.0
  %142 = vadd.xlane.f32.xlu0 %v141
  %v143 = vpop.xlane.xlu0 %142
  %v144 = vsel %vm42, %v131, %v135
  %v145 = vsel %vm44, %v144, %v139
  %v146 = vsel %vm46, %v145, %v143
  %v147 = vadd.f32 %v146, %v51
  %v148 = vtanh.pop %v147
  %v149 = vmul.f32 %v127, 0.9
  %v150 = vmul.f32 %v148, 0.1
  %v151 = vadd.f32 %v149, %v150
  %v152 = vmul.f32 %v151, %v12
  %v153 = vsel %vm14, %v152, 0.0
  %154 = vadd.xlane.f32.xlu0 %v153
  %v155 = vpop.xlane.xlu0 %154
  %v156 = vmul.f32 %v151, %v21
  %v157 = vsel %vm14, %v156, 0.0
  %158 = vadd.xlane.f32.xlu0 %v157
  %v159 = vpop.xlane.xlu0 %158
  %v160 = vmul.f32 %v151, %v29
  %v161 = vsel %vm14, %v160, 0.0
  %162 = vadd.xlane.f32.xlu0 %v161
  %v163 = vpop.xlane.xlu0 %162
  %v164 = vmul.f32 %v151, %v37
  %v165 = vsel %vm14, %v164, 0.0
  %166 = vadd.xlane.f32.xlu0 %v165
  %v167 = vpop.xlane.xlu0 %166
  %v168 = vsel %vm42, %v155, %v159
  %v169 = vsel %vm44, %v168, %v163
  %v170 = vsel %vm46, %v169, %v167
  %v171 = vadd.f32 %v170, %v51
  %v172 = vtanh.pop %v171
  %v173 = vmul.f32 %v151, 0.9
  %v174 = vmul.f32 %v172, 0.1
  %v175 = vadd.f32 %v173, %v174
  %v176 = vmul.f32 %v175, %v12
  %v177 = vsel %vm14, %v176, 0.0
  %178 = vadd.xlane.f32.xlu0 %v177
  %v179 = vpop.xlane.xlu0 %178
  %v180 = vmul.f32 %v175, %v21
  %v181 = vsel %vm14, %v180, 0.0
  %182 = vadd.xlane.f32.xlu0 %v181
  %v183 = vpop.xlane.xlu0 %182
  %v184 = vmul.f32 %v175, %v29
  %v185 = vsel %vm14, %v184, 0.0
  %186 = vadd.xlane.f32.xlu0 %v185
  %v187 = vpop.xlane.xlu0 %186
  %v188 = vmul.f32 %v175, %v37
  %v189 = vsel %vm14, %v188, 0.0
  %190 = vadd.xlane.f32.xlu0 %v189
  %v191 = vpop.xlane.xlu0 %190
  %v192 = vsel %vm42, %v179, %v183
  %v193 = vsel %vm44, %v192, %v187
  %v194 = vsel %vm46, %v193, %v191
  %v195 = vadd.f32 %v194, %v51
  %v196 = vtanh.pop %v195
  %v197 = vmul.f32 %v175, 0.9
  %v198 = vmul.f32 %v196, 0.1
  %v199 = vadd.f32 %v197, %v198
  %v200 = vmul.f32 %v199, %v12
  %v201 = vsel %vm14, %v200, 0.0
  %202 = vadd.xlane.f32.xlu0 %v201
  %v203 = vpop.xlane.xlu0 %202
  %v204 = vmul.f32 %v199, %v21
  %v205 = vsel %vm14, %v204, 0.0
  %206 = vadd.xlane.f32.xlu0 %v205
  %v207 = vpop.xlane.xlu0 %206
  %v208 = vmul.f32 %v199, %v29
  %v209 = vsel %vm14, %v208, 0.0
  %210 = vadd.xlane.f32.xlu0 %v209
  %v211 = vpop.xlane.xlu0 %210
  %v212 = vmul.f32 %v199, %v37
  %v213 = vsel %vm14, %v212, 0.0
  %214 = vadd.xlane.f32.xlu0 %v213
  %v215 = vpop.xlane.xlu0 %214
  %v216 = vsel %vm42, %v203, %v207
  %v217 = vsel %vm44, %v216, %v211
  %v218 = vsel %vm46, %v217, %v215
  %v219 = vadd.f32 %v218, %v51
  %v220 = vtanh.pop %v219
  %v221 = vmul.f32 %v199, 0.9
  %v222 = vmul.f32 %v220, 0.1
  %v223 = vadd.f32 %v221, %v222
  %225 = vrot.lane.b32.xlu0 %v79, 4
  %v226 = vpop.permute.xlu0 %225
  %229 = vrot.lane.b32.xlu0 %v103, 8
  %v230 = vpop.permute.xlu0 %229
  %233 = vrot.lane.b32.xlu0 %v127, 12
  %v234 = vpop.permute.xlu0 %233
  %237 = vrot.lane.b32.xlu0 %v151, 16
  %v238 = vpop.permute.xlu0 %237
  %241 = vrot.lane.b32.xlu0 %v175, 20
  %v242 = vpop.permute.xlu0 %241
  %245 = vrot.lane.b32.xlu0 %v199, 24
  %v246 = vpop.permute.xlu0 %245
  %249 = vrot.lane.b32.xlu0 %v223, 28
  %v250 = vpop.permute.xlu0 %249
  %v252 = vsel %vm14, %v55, %v226
  %vm253 = vcmask 64512
  %v254 = vsel %vm253, %v252, %v230
  %vm255 = vcmask 97280
  %v256 = vsel %vm255, %v254, %v234
  %vm257 = vcmask 130048
  %v258 = vsel %vm257, %v256, %v238
  %vm259 = vcmask 162816
  %v260 = vsel %vm259, %v258, %v242
  %vm261 = vcmask 195584
  %v262 = vsel %vm261, %v260, %v246
  %vm263 = vcmask 228352
  %v264 = vsel %vm263, %v262, %v250
  %vm265 = vcmask 261120
  %v266 = vsel %vm265, %v264, 0.0
  %267 = vst [vmem:[%s1] sm:$0x1] %v266
  // Predicated region
  $region6: #{decoder_forward.1} parent=0 // pred_check
    _
  $region7: #{decoder_forward.1} parent=0 // pred_check_branch
    %269 = sbr.rel (0) target = $region9
  $region8: #{decoder_forward.1} parent=0 // pred_region
    _
  $region9: #{decoder_forward.1} parent=0 // pred_fallthru
    _
  // Predicated region
  $region10: #{decoder_forward.1} parent=0 // pred_check
    _
  $region11: #{decoder_forward.1} parent=0 // pred_check_branch
    %271 = sbr.rel (0) target = $region13
  $region12: #{decoder_forward.1} parent=0 // pred_region
    _
  $region13: #{decoder_forward.1} parent=0 // pred_fallthru
    _

</llo_original>
